<compile_context>
chip_gen: v5e
topology: v5e:2x2
jax: 0.10.0
libtpu: 0.0.40
codegen_flags: <defaults>
</compile_context>

<pallas_src>
import jax
import jax.numpy as jnp
from jax.experimental import pallas as pl
from jax.experimental.pallas import tpu as pltpu


_LANES = 128
_MAX_COLS = 4096                      # widest lane-dense slab we build
_TARGET_BLOCK_BYTES = 2 * 1024 * 1024  # ~2 MiB tile -> ~8 MiB double-buffered


def _swish_kernel(x_ref, o_ref):
    x = x_ref[...]
    if x.dtype == jnp.float32:
        # No astype round-trip for f32 inputs.
        o_ref[...] = x * jax.nn.sigmoid(x)
    else:
        # bf16/f16: keep HBM traffic at the narrow dtype, upcast only in-core
        # for the transcendental (required on v5e: no bf16 EUP/VPU).
        xf = x.astype(jnp.float32)
        o_ref[...] = (xf * jax.nn.sigmoid(xf)).astype(o_ref.dtype)


def _sublane(dtype):
    itemsize = jnp.dtype(dtype).itemsize
    return {4: 8, 2: 16, 1: 32}.get(itemsize, 8)


def _swish_impl(x):
    orig_shape = x.shape
    dtype = x.dtype
    n = x.size
    if n == 0:
        return x

    sub = _sublane(dtype)
    itemsize = jnp.dtype(dtype).itemsize

    x_flat = x.reshape(-1)
    pad = 0
    if n % _LANES != 0:
        # Rare ragged case: pad to a (sublane*lane)-aligned length (one copy).
        n_pad = pl.cdiv(n, sub * _LANES) * (sub * _LANES)
        pad = n_pad - n
        x_flat = jnp.pad(x_flat, (0, pad))
    n_work = n + pad

    # Lane-dense factorization: cols = widest multiple of 128 (<= _MAX_COLS)
    # that divides the flat length.  Pure metadata reshape, no HBM copy.
    m = n_work // _LANES
    k = 1
    for cand in range(min(_MAX_COLS // _LANES, m), 0, -1):
        if m % cand == 0:
            k = cand
            break
    cols = k * _LANES
    rows = n_work // cols
    x2d = x_flat.reshape(rows, cols)

    # Pick big row-blocks (~2 MiB) to amortize the ~0.35us/step grid overhead,
    # preferring a block_rows that evenly divides rows (no ragged tail); the
    # cdiv grid handles the non-dividing fallback with masked boundary writes.
    row_bytes = cols * itemsize
    if rows * row_bytes <= _TARGET_BLOCK_BYTES or rows <= sub:
        block_rows = rows
        grid = (1,)
    else:
        target_rows = max(sub, (_TARGET_BLOCK_BYTES // row_bytes) // sub * sub)
        block_rows = target_rows
        d = target_rows
        while d >= sub:
            if rows % d == 0:
                block_rows = d
                break
            d -= sub
        grid = (pl.cdiv(rows, block_rows),)

    out2d = pl.pallas_call(
        _swish_kernel,
        out_shape=jax.ShapeDtypeStruct((rows, cols), dtype),
        grid_spec=pltpu.PrefetchScalarGridSpec(
            num_scalar_prefetch=0,
            grid=grid,
            in_specs=[pl.BlockSpec((block_rows, cols), lambda i: (i, 0))],
            out_specs=pl.BlockSpec((block_rows, cols), lambda i: (i, 0)),
        ),
        # Single "parallel" axis -> megacore sharding on v7x's 2 TensorCores.
        compiler_params=pltpu.CompilerParams(
            dimension_semantics=("parallel",),
        ),
    )(x2d)

    out_flat = out2d.reshape(-1)
    if pad:
        out_flat = out_flat[:n]
    return out_flat.reshape(orig_shape)


# jit the wrapper so the (rare) pad/slice and the reshapes fuse with the call.
swish = jax.jit(_swish_impl)


if __name__ == "__main__":
    key = jax.random.PRNGKey(0)
    # NCHW input, matching the PyTorch module's typical use.
    x = jax.random.normal(key, (2, 4, 16, 16), dtype=jnp.float32)

    y = swish(x)
    jax.block_until_ready(y)

    # Reference check (pure JAX). Matches Swish.forward (in-place or not,
    # the returned value is x * sigmoid(x)).
    y_ref = x * jax.nn.sigmoid(x)
    assert y.shape == x.shape and y.dtype == x.dtype
    assert jnp.allclose(y, y_ref, atol=1e-6, rtol=1e-6)

    print("KERNEL_OK")
</pallas_src>

<mosaic_0001>
module attributes {stable_mosaic.version = 11 : i64} {
  func.func @_swish_kernel(%arg0: i32, %arg1: memref<1x2048xf32, #tpu.memory_space<vmem>>, %arg2: memref<1x2048xf32, #tpu.memory_space<vmem>>) attributes {dimension_semantics = [#tpu.dimension_semantics<parallel>], iteration_bounds = array<i64: 1>, scalar_prefetch = 0 : i64, scratch_operands = 0 : i64, tpu.core_type = #tpu.core_type<tc>, window_params = [{transform_indices = @transform_0, window_bounds = array<i64: 1, 2048>}, {transform_indices = @transform_1, window_bounds = array<i64: 1, 2048>}]} {
    %c0 = arith.constant 0 : index
    %c0_0 = arith.constant 0 : index
    %0 = vector.load %arg1[%c0, %c0_0] : memref<1x2048xf32, #tpu.memory_space<vmem>>, vector<1x2048xf32>
    %1 = arith.negf %0 : vector<1x2048xf32>
    %2 = math.exp %1 : vector<1x2048xf32>
    %cst = arith.constant 1.000000e+00 : f32
    %3 = vector.broadcast %cst : f32 to vector<1x2048xf32>
    %4 = arith.addf %3, %2 : vector<1x2048xf32>
    %5 = arith.divf %3, %4 : vector<1x2048xf32>
    %6 = arith.mulf %0, %5 : vector<1x2048xf32>
    %c0_1 = arith.constant 0 : index
    %c0_2 = arith.constant 0 : index
    %7 = vector.load %arg2[%c0_1, %c0_2] : memref<1x2048xf32, #tpu.memory_space<vmem>>, vector<1x2048xf32>
    tpu.vector_store %arg2[%c0_1, %c0_2], %6 {strides = array<i32>} : memref<1x2048xf32, #tpu.memory_space<vmem>>, vector<1x2048xf32>,
    return
  }
  func.func @transform_0(%arg0: i32) -> (i32, i32) {
    %c0_i32 = arith.constant 0 : i32
    %c0_i32_0 = arith.constant 0 : i32
    return %arg0, %c0_i32 : i32, i32
  }
  func.func @transform_1(%arg0: i32) -> (i32, i32) {
    %c0_i32 = arith.constant 0 : i32
    %c0_i32_0 = arith.constant 0 : i32
    return %arg0, %c0_i32 : i32, i32
  }
}

</mosaic_0001>

<llo_original>
// kernel: _swish_impl.1
$region0: #{_swish_impl.1}
  #allocation0 [shape = 'u32[]', space=smem, size = 0x4, offset = 0x4, fixed_abs, tag = 'smem constant byte address 0x4 - core index']
  #allocation1 [shape = 'u32[72,128]{1,0:T(1,128)}', space=vmem, size = 0x9000, scoped, tag = 'internal scratch']
  %s0 = inlined_call_operand.vmem [shape: f32[1,2048], index: 0, kind: input, shape index: {}]
  %s1 = inlined_call_operand.vmem [shape: f32[1,2048], index: 1, kind: output, shape index: {}]
  %s2 = sld [smem:[#allocation0]]
  $region14: #{_swish_impl.1} parent=0
    _
  %s4 = ssub.s32 1, %s2
  %s5 = scalar_select 0, %s4, %s2
  // Predicated region
  $region2: #{_swish_impl.1} parent=0 // pred_check
    _
  $region3: #{_swish_impl.1} parent=0 // pred_check_branch
    %7 = sbr.rel (0) target = $region5
  $region4: #{_swish_impl.1} parent=0 // pred_region
    _
  $region5: #{_swish_impl.1} parent=0 // pred_fallthru
    _
  %v8 = vld [vmem:[%s0] sm:$0xff]
  %v9 = vld [vmem:[%s0 + $0x8] sm:$0xff]
  %v10 = vxor.u32 %v8, 2147483648
  %v11 = vxor.u32 %v9, 2147483648
  %v12 = vmul.f32 %v10, 1.442695
  %v13 = vpow.pop %v12
  %v14 = vmul.f32 %v11, 1.442695
  %v15 = vpow.pop %v14
  %v16 = vadd.f32 %v13, 1.0
  %v17 = vadd.f32 %v15, 1.0
  %v18 = vrcp.pop %v16
  %v19 = vmul.f32 %v16, %v18
  %v20 = vsub.f32 1.0, %v19
  %v21 = vmul.f32 %v18, %v20
  %v22 = vadd.f32 %v18, %v21
  %vm23 = vweird.f32 %v16
  %vm24 = vweird.f32 %v18
  %vm25 = vmor %vm23, %vm24
  %v26 = vsel %vm25, %v18, %v22
  %v27 = vand.u32 2147483647, %v16
  %vm28 = vcmp.eq.f32.partialorder %v27, 8.507059e+37
  %v29 = vand.u32 %v16, 2147483648
  %v30 = vor.u32 1.1754944e-38, %v29
  %v31 = vsel %vm28, %v30, %v26
  %v32 = vmul.f32 1.0, %v31
  %v33 = vrcp.pop %v17
  %v34 = vmul.f32 %v17, %v33
  %v35 = vsub.f32 1.0, %v34
  %v36 = vmul.f32 %v33, %v35
  %v37 = vadd.f32 %v33, %v36
  %vm38 = vweird.f32 %v17
  %vm39 = vweird.f32 %v33
  %vm40 = vmor %vm38, %vm39
  %v41 = vsel %vm40, %v33, %v37
  %v42 = vand.u32 2147483647, %v17
  %vm43 = vcmp.eq.f32.partialorder %v42, 8.507059e+37
  %v44 = vand.u32 %v17, 2147483648
  %v45 = vor.u32 1.1754944e-38, %v44
  %v46 = vsel %vm43, %v45, %v41
  %v47 = vmul.f32 1.0, %v46
  %v48 = vmul.f32 %v8, %v32
  %v49 = vmul.f32 %v9, %v47
  %50 = vst [vmem:[%s1] sm:$0xff] %v48
  %51 = vst [vmem:[%s1 + $0x8] sm:$0xff] %v49
  // Predicated region
  $region6: #{_swish_impl.1} parent=0 // pred_check
    _
  $region7: #{_swish_impl.1} parent=0 // pred_check_branch
    %53 = sbr.rel (0) target = $region9
  $region8: #{_swish_impl.1} parent=0 // pred_region
    _
  $region9: #{_swish_impl.1} parent=0 // pred_fallthru
    _
  // Predicated region
  $region10: #{_swish_impl.1} parent=0 // pred_check
    _
  $region11: #{_swish_impl.1} parent=0 // pred_check_branch
    %55 = sbr.rel (0) target = $region13
  $region12: #{_swish_impl.1} parent=0 // pred_region
    _
  $region13: #{_swish_impl.1} parent=0 // pred_fallthru
    _

</llo_original>
